<compile_context>
chip_gen: v7x
topology: tpu7x:2x2x1
jax: 0.10.0
libtpu: 0.0.40
codegen_flags: <defaults>
</compile_context>

<pallas_src>
import functools

import jax
import jax.numpy as jnp
from jax.experimental import pallas as pl
from jax.experimental.pallas import tpu as pltpu


def _round_up(n, m):
    return ((n + m - 1) // m) * m


def _vae_kernel(x_ref, eps_ref,
                w1_ref, b1_ref, w2m_ref, b2m_ref, w2v_ref, b2v_ref,
                wd1_ref, bd1_ref, wd2_ref, bd2_ref,
                xhat_ref, mean_ref, logvar_ref):
    """Folded-batch VAE forward.

    x_ref   : (TMf, F*input_dim)  f32   (F samples per row, lane-dense)
    eps_ref : (TMf, F*latent)     f32
    weights : block-diagonal (kron(eye(F), W)) so each 128-lane row is F
              independent samples; all math stays f32 (MXU <1% utilized).
    """
    x = x_ref[...]

    # ---- encoder: Linear(input_dim,16) -> ReLU -> Linear(16, 2*latent) ----
    h = jnp.dot(x, w1_ref[...], preferred_element_type=jnp.float32) + b1_ref[...]
    h = jnp.maximum(h, 0.0)
    mean = jnp.dot(h, w2m_ref[...], preferred_element_type=jnp.float32) + b2m_ref[...]
    logvar = jnp.dot(h, w2v_ref[...], preferred_element_type=jnp.float32) + b2v_ref[...]

    # ---- reparameterize: z = mean + eps * exp(0.5 * logvar) ----
    z = mean + eps_ref[...] * jnp.exp(0.5 * logvar)

    # ---- decoder: Linear(latent,16) -> ReLU -> Linear(16,input_dim) -> Sigmoid ----
    h2 = jnp.dot(z, wd1_ref[...], preferred_element_type=jnp.float32) + bd1_ref[...]
    h2 = jnp.maximum(h2, 0.0)
    logits = jnp.dot(h2, wd2_ref[...], preferred_element_type=jnp.float32) + bd2_ref[...]

    # Lane-dense stores; x_hat (largest stream) in bf16, mean/logvar in f32.
    xhat_ref[...] = jax.nn.sigmoid(logits).astype(xhat_ref.dtype)
    mean_ref[...] = mean
    logvar_ref[...] = logvar


@functools.partial(jax.jit, static_argnames=("latent_dim",))
def vae_forward(x, params, eps, *, latent_dim):
    """VAE forward pass as one batched Pallas kernel.

    x:      [B, input_dim] float32
    eps:    [B, latent_dim] float32 (standard-normal noise, deterministic here)
    params: dict of f32 weights/biases (see init_params).
    Returns (x_hat [B, input_dim] bf16, mean [B, latent_dim] f32,
             logvar [B, latent_dim] f32).
    """
    B, input_dim = x.shape
    hidden = params["w1"].shape[1]

    # Fold factor: pack F consecutive samples per 128-lane row (pure layout;
    # the wrapper reshapes are free on contiguous arrays).
    if input_dim <= 128 and 128 % input_dim == 0:
        F = 128 // input_dim
    else:
        F = 1

    # ---- batch tile selection ----
    align = max(8, F)
    Bp0 = _round_up(B, align)
    if Bp0 <= 1024:
        # Small batch: one grid step (fixed ~0.35us/step overhead dominates).
        TM = Bp0
    else:
        # Large batch: >=2 grid steps so the "parallel" axis can shard across
        # both v7x TensorCores; cap tiles around 2048 rows, align so folded
        # blocks stay (16,128)-friendly for the bf16 output.
        nsteps = max(2, -(-Bp0 // 2048))
        TM = _round_up(-(-Bp0 // nsteps), max(64, 16 * F))
    Bp = _round_up(B, TM)
    grid = (Bp // TM,)
    TMf = TM // F

    pad = Bp - B
    if pad:
        x = jnp.pad(x, ((0, pad), (0, 0)))
        eps = jnp.pad(eps, ((0, pad), (0, 0)))

    # Free row-major reshapes into the folded (lane-dense) layout.
    xf = x.reshape(Bp // F, F * input_dim)
    epsf = eps.reshape(Bp // F, F * latent_dim)

    # Block-diagonal weights / tiled biases (tiny, built per call under jit).
    eyeF = jnp.eye(F, dtype=jnp.float32)

    def blockdiag(w):
        return jnp.kron(eyeF, w)

    def tileb(b):
        return jnp.tile(b, (1, F))

    w2, b2 = params["w2"], params["b2"]
    w1b, b1b = blockdiag(params["w1"]), tileb(params["b1"])
    w2mb, b2mb = blockdiag(w2[:, :latent_dim]), tileb(b2[:, :latent_dim])
    w2vb, b2vb = blockdiag(w2[:, latent_dim:]), tileb(b2[:, latent_dim:])
    wd1b, bd1b = blockdiag(params["wd1"]), tileb(params["bd1"])
    wd2b, bd2b = blockdiag(params["wd2"]), tileb(params["bd2"])
    consts = (w1b, b1b, w2mb, b2mb, w2vb, b2vb, wd1b, bd1b, wd2b, bd2b)

    def batch_spec(feat):
        # blocked along the batch grid axis (folded rows)
        return pl.BlockSpec((TMf, feat), lambda i: (i, 0))

    def const_spec(arr):
        # full array, same block every step -> stays VMEM-resident
        nd = arr.ndim
        return pl.BlockSpec(arr.shape, lambda i, _nd=nd: (0,) * _nd)

    in_specs = [batch_spec(F * input_dim), batch_spec(F * latent_dim)] + \
               [const_spec(a) for a in consts]

    out_shapes = (
        jax.ShapeDtypeStruct((Bp // F, F * input_dim), jnp.bfloat16),   # x_hat
        jax.ShapeDtypeStruct((Bp // F, F * latent_dim), jnp.float32),   # mean
        jax.ShapeDtypeStruct((Bp // F, F * latent_dim), jnp.float32),   # logvar
    )
    out_specs = (
        batch_spec(F * input_dim),
        batch_spec(F * latent_dim),
        batch_spec(F * latent_dim),
    )

    weight_bytes = sum(int(a.size) * a.dtype.itemsize for a in consts)
    cost = pl.CostEstimate(
        flops=2 * Bp * hidden * (2 * input_dim + 3 * latent_dim),
        transcendentals=Bp * (latent_dim + input_dim),          # exp + sigmoid
        bytes_accessed=(Bp * input_dim * 4                      # x (f32)
                        + Bp * latent_dim * 4                   # eps
                        + Bp * input_dim * 2                    # x_hat (bf16)
                        + Bp * 2 * latent_dim * 4               # mean + logvar
                        + weight_bytes),
    )

    x_hat_f, mean_f, logvar_f = pl.pallas_call(
        _vae_kernel,
        grid=grid,
        out_shape=out_shapes,
        in_specs=in_specs,
        out_specs=out_specs,
        compiler_params=pltpu.CompilerParams(
            dimension_semantics=("parallel",)),
        cost_estimate=cost,
    )(xf, epsf, *consts)

    # Free reshapes back to per-sample layout, then drop padded rows.
    x_hat = x_hat_f.reshape(Bp, input_dim)[:B]
    mean = mean_f.reshape(Bp, latent_dim)[:B]
    logvar = logvar_f.reshape(Bp, latent_dim)[:B]
    return x_hat, mean, logvar


def init_params(key, input_dim, latent_dim, hidden=16):
    """Deterministic synthetic parameters (shapes match the PyTorch module)."""
    ks = jax.random.split(key, 8)

    def lin(kw, kb, fan_in, fan_out):
        scale = 1.0 / jnp.sqrt(jnp.float32(fan_in))
        w = jax.random.uniform(kw, (fan_in, fan_out), jnp.float32, -scale, scale)
        b = jax.random.uniform(kb, (1, fan_out), jnp.float32, -scale, scale)
        return w, b

    w1, b1 = lin(ks[0], ks[1], input_dim, hidden)            # encoder[0]
    w2, b2 = lin(ks[2], ks[3], hidden, latent_dim * 2)       # encoder[2]
    wd1, bd1 = lin(ks[4], ks[5], latent_dim, hidden)         # decoder[0]
    wd2, bd2 = lin(ks[6], ks[7], hidden, input_dim)          # decoder[2]
    return {"w1": w1, "b1": b1, "w2": w2, "b2": b2,
            "wd1": wd1, "bd1": bd1, "wd2": wd2, "bd2": bd2}


def vae_reference(x, params, eps):
    """Pure-JAX f32 reference (high-precision matmuls)."""
    hp = jax.lax.Precision.HIGHEST
    h = jnp.dot(x, params["w1"], precision=hp) + params["b1"]
    h = jnp.maximum(h, 0.0)
    enc = jnp.dot(h, params["w2"], precision=hp) + params["b2"]
    L = params["wd1"].shape[0]
    mean, logvar = enc[:, :L], enc[:, L:]
    z = mean + eps * jnp.exp(0.5 * logvar)
    h2 = jnp.maximum(jnp.dot(z, params["wd1"], precision=hp) + params["bd1"], 0.0)
    logits = jnp.dot(h2, params["wd2"], precision=hp) + params["bd2"]
    return jax.nn.sigmoid(logits), mean, logvar


if __name__ == "__main__":
    key = jax.random.PRNGKey(0)
    k_x, k_eps, k_params = jax.random.split(key, 3)

    batch = 8
    input_dim = 32
    latent_dim = 8

    x = jax.random.normal(k_x, (batch, input_dim), jnp.float32)
    # torch.randn_like(std) noise is supplied externally (deterministic here).
    eps = jax.random.normal(k_eps, (batch, latent_dim), jnp.float32)
    params = init_params(k_params, input_dim, latent_dim)

    x_hat, mean, logvar = vae_forward(x, params, eps, latent_dim=latent_dim)
    jax.block_until_ready((x_hat, mean, logvar))

    # sanity check against the pure-JAX reference
    x_hat_ref, mean_ref, logvar_ref = vae_reference(x, params, eps)
    assert x_hat.shape == (batch, input_dim)
    assert mean.shape == (batch, latent_dim)
    assert logvar.shape == (batch, latent_dim)
    # mean/logvar are f32; x_hat is stored in bf16 (looser tolerance).
    assert jnp.allclose(mean, mean_ref, atol=5e-3, rtol=5e-3)
    assert jnp.allclose(logvar, logvar_ref, atol=5e-3, rtol=5e-3)
    assert jnp.allclose(x_hat.astype(jnp.float32), x_hat_ref, atol=2e-2, rtol=2e-2)

    print("KERNEL_OK")
</pallas_src>

<mosaic_0001>
module attributes {stable_mosaic.version = 11 : i64} {
  func.func @_vae_kernel(%arg0: i32, %arg1: memref<2x128xf32, #tpu.memory_space<vmem>>, %arg2: memref<2x32xf32, #tpu.memory_space<vmem>>, %arg3: memref<128x64xf32, #tpu.memory_space<vmem>>, %arg4: memref<1x64xf32, #tpu.memory_space<vmem>>, %arg5: memref<64x32xf32, #tpu.memory_space<vmem>>, %arg6: memref<1x32xf32, #tpu.memory_space<vmem>>, %arg7: memref<64x32xf32, #tpu.memory_space<vmem>>, %arg8: memref<1x32xf32, #tpu.memory_space<vmem>>, %arg9: memref<32x64xf32, #tpu.memory_space<vmem>>, %arg10: memref<1x64xf32, #tpu.memory_space<vmem>>, %arg11: memref<64x128xf32, #tpu.memory_space<vmem>>, %arg12: memref<1x128xf32, #tpu.memory_space<vmem>>, %arg13: memref<2x128xbf16, #tpu.memory_space<vmem>>, %arg14: memref<2x32xf32, #tpu.memory_space<vmem>>, %arg15: memref<2x32xf32, #tpu.memory_space<vmem>>) attributes {dimension_semantics = [#tpu.dimension_semantics<parallel>], iteration_bounds = array<i64: 1>, scalar_prefetch = 0 : i64, scratch_operands = 0 : i64, tpu.core_type = #tpu.core_type<tc>, window_params = [{transform_indices = @transform_0, window_bounds = array<i64: 2, 128>}, {transform_indices = @transform_1, window_bounds = array<i64: 2, 32>}, {pipeline_mode = #tpu.pipeline_mode<synchronous>, transform_indices = @transform_2, window_bounds = array<i64: 128, 64>}, {pipeline_mode = #tpu.pipeline_mode<synchronous>, transform_indices = @transform_3, window_bounds = array<i64: 1, 64>}, {pipeline_mode = #tpu.pipeline_mode<synchronous>, transform_indices = @transform_4, window_bounds = array<i64: 64, 32>}, {pipeline_mode = #tpu.pipeline_mode<synchronous>, transform_indices = @transform_5, window_bounds = array<i64: 1, 32>}, {pipeline_mode = #tpu.pipeline_mode<synchronous>, transform_indices = @transform_6, window_bounds = array<i64: 64, 32>}, {pipeline_mode = #tpu.pipeline_mode<synchronous>, transform_indices = @transform_7, window_bounds = array<i64: 1, 32>}, {pipeline_mode = #tpu.pipeline_mode<synchronous>, transform_indices = @transform_8, window_bounds = array<i64: 32, 64>}, {pipeline_mode = #tpu.pipeline_mode<synchronous>, transform_indices = @transform_9, window_bounds = array<i64: 1, 64>}, {pipeline_mode = #tpu.pipeline_mode<synchronous>, transform_indices = @transform_10, window_bounds = array<i64: 64, 128>}, {pipeline_mode = #tpu.pipeline_mode<synchronous>, transform_indices = @transform_11, window_bounds = array<i64: 1, 128>}, {transform_indices = @transform_12, window_bounds = array<i64: 2, 128>}, {transform_indices = @transform_13, window_bounds = array<i64: 2, 32>}, {transform_indices = @transform_14, window_bounds = array<i64: 2, 32>}]} {
    %c0 = arith.constant 0 : index
    %c0_0 = arith.constant 0 : index
    %0 = vector.load %arg1[%c0, %c0_0] : memref<2x128xf32, #tpu.memory_space<vmem>>, vector<2x128xf32>
    %c0_1 = arith.constant 0 : index
    %c0_2 = arith.constant 0 : index
    %1 = vector.load %arg3[%c0_1, %c0_2] : memref<128x64xf32, #tpu.memory_space<vmem>>, vector<128x64xf32>
    %cst = arith.constant dense<0.000000e+00> : vector<2x64xf32>
    %2 = tpu.matmul %0, %1, %cst {dimension_numbers = #tpu.dot_dimension_numbers<[1], [0], [0], [1], [0, 0, 1, 1], [], []>} : vector<2x128xf32>, vector<128x64xf32>, vector<2x64xf32> -> vector<2x64xf32>
    %c0_3 = arith.constant 0 : index
    %c0_4 = arith.constant 0 : index
    %3 = vector.load %arg4[%c0_3, %c0_4] : memref<1x64xf32, #tpu.memory_space<vmem>>, vector<1x64xf32>
    %4 = vector.broadcast %3 : vector<1x64xf32> to vector<2x64xf32>
    %5 = arith.addf %2, %4 : vector<2x64xf32>
    %cst_5 = arith.constant 0.000000e+00 : f32
    %6 = vector.broadcast %cst_5 : f32 to vector<2x64xf32>
    %7 = arith.maximumf %5, %6 : vector<2x64xf32>
    %c0_6 = arith.constant 0 : index
    %c0_7 = arith.constant 0 : index
    %8 = vector.load %arg5[%c0_6, %c0_7] : memref<64x32xf32, #tpu.memory_space<vmem>>, vector<64x32xf32>
    %cst_8 = arith.constant dense<0.000000e+00> : vector<2x32xf32>
    %9 = tpu.matmul %7, %8, %cst_8 {dimension_numbers = #tpu.dot_dimension_numbers<[1], [0], [0], [1], [0, 0, 1, 1], [], []>} : vector<2x64xf32>, vector<64x32xf32>, vector<2x32xf32> -> vector<2x32xf32>
    %c0_9 = arith.constant 0 : index
    %c0_10 = arith.constant 0 : index
    %10 = vector.load %arg6[%c0_9, %c0_10] : memref<1x32xf32, #tpu.memory_space<vmem>>, vector<1x32xf32>
    %11 = vector.broadcast %10 : vector<1x32xf32> to vector<2x32xf32>
    %12 = arith.addf %9, %11 : vector<2x32xf32>
    %c0_11 = arith.constant 0 : index
    %c0_12 = arith.constant 0 : index
    %13 = vector.load %arg7[%c0_11, %c0_12] : memref<64x32xf32, #tpu.memory_space<vmem>>, vector<64x32xf32>
    %cst_13 = arith.constant dense<0.000000e+00> : vector<2x32xf32>
    %14 = tpu.matmul %7, %13, %cst_13 {dimension_numbers = #tpu.dot_dimension_numbers<[1], [0], [0], [1], [0, 0, 1, 1], [], []>} : vector<2x64xf32>, vector<64x32xf32>, vector<2x32xf32> -> vector<2x32xf32>
    %c0_14 = arith.constant 0 : index
    %c0_15 = arith.constant 0 : index
    %15 = vector.load %arg8[%c0_14, %c0_15] : memref<1x32xf32, #tpu.memory_space<vmem>>, vector<1x32xf32>
    %16 = vector.broadcast %15 : vector<1x32xf32> to vector<2x32xf32>
    %17 = arith.addf %14, %16 : vector<2x32xf32>
    %c0_16 = arith.constant 0 : index
    %c0_17 = arith.constant 0 : index
    %18 = vector.load %arg2[%c0_16, %c0_17] : memref<2x32xf32, #tpu.memory_space<vmem>>, vector<2x32xf32>
    %cst_18 = arith.constant 5.000000e-01 : f32
    %19 = vector.broadcast %cst_18 : f32 to vector<2x32xf32>
    %20 = arith.mulf %19, %17 : vector<2x32xf32>
    %21 = math.exp %20 : vector<2x32xf32>
    %22 = arith.mulf %18, %21 : vector<2x32xf32>
    %23 = arith.addf %12, %22 : vector<2x32xf32>
    %c0_19 = arith.constant 0 : index
    %c0_20 = arith.constant 0 : index
    %24 = vector.load %arg9[%c0_19, %c0_20] : memref<32x64xf32, #tpu.memory_space<vmem>>, vector<32x64xf32>
    %cst_21 = arith.constant dense<0.000000e+00> : vector<2x64xf32>
    %25 = tpu.matmul %23, %24, %cst_21 {dimension_numbers = #tpu.dot_dimension_numbers<[1], [0], [0], [1], [0, 0, 1, 1], [], []>} : vector<2x32xf32>, vector<32x64xf32>, vector<2x64xf32> -> vector<2x64xf32>
    %c0_22 = arith.constant 0 : index
    %c0_23 = arith.constant 0 : index
    %26 = vector.load %arg10[%c0_22, %c0_23] : memref<1x64xf32, #tpu.memory_space<vmem>>, vector<1x64xf32>
    %27 = vector.broadcast %26 : vector<1x64xf32> to vector<2x64xf32>
    %28 = arith.addf %25, %27 : vector<2x64xf32>
    %cst_24 = arith.constant 0.000000e+00 : f32
    %29 = vector.broadcast %cst_24 : f32 to vector<2x64xf32>
    %30 = arith.maximumf %28, %29 : vector<2x64xf32>
    %c0_25 = arith.constant 0 : index
    %c0_26 = arith.constant 0 : index
    %31 = vector.load %arg11[%c0_25, %c0_26] : memref<64x128xf32, #tpu.memory_space<vmem>>, vector<64x128xf32>
    %cst_27 = arith.constant dense<0.000000e+00> : vector<2x128xf32>
    %32 = tpu.matmul %30, %31, %cst_27 {dimension_numbers = #tpu.dot_dimension_numbers<[1], [0], [0], [1], [0, 0, 1, 1], [], []>} : vector<2x64xf32>, vector<64x128xf32>, vector<2x128xf32> -> vector<2x128xf32>
    %c0_28 = arith.constant 0 : index
    %c0_29 = arith.constant 0 : index
    %33 = vector.load %arg12[%c0_28, %c0_29] : memref<1x128xf32, #tpu.memory_space<vmem>>, vector<1x128xf32>
    %34 = vector.broadcast %33 : vector<1x128xf32> to vector<2x128xf32>
    %35 = arith.addf %32, %34 : vector<2x128xf32>
    %36 = arith.negf %35 : vector<2x128xf32>
    %37 = math.exp %36 : vector<2x128xf32>
    %cst_30 = arith.constant 1.000000e+00 : f32
    %38 = vector.broadcast %cst_30 : f32 to vector<2x128xf32>
    %39 = arith.addf %38, %37 : vector<2x128xf32>
    %40 = arith.divf %38, %39 : vector<2x128xf32>
    %41 = arith.truncf %40 : vector<2x128xf32> to vector<2x128xbf16>
    %c0_31 = arith.constant 0 : index
    %c0_32 = arith.constant 0 : index
    %42 = vector.load %arg13[%c0_31, %c0_32] : memref<2x128xbf16, #tpu.memory_space<vmem>>, vector<2x128xbf16>
    tpu.vector_store %arg13[%c0_31, %c0_32], %41 {strides = array<i32>} : memref<2x128xbf16, #tpu.memory_space<vmem>>, vector<2x128xbf16>,
    %c0_33 = arith.constant 0 : index
    %c0_34 = arith.constant 0 : index
    %43 = vector.load %arg14[%c0_33, %c0_34] : memref<2x32xf32, #tpu.memory_space<vmem>>, vector<2x32xf32>
    tpu.vector_store %arg14[%c0_33, %c0_34], %12 {strides = array<i32>} : memref<2x32xf32, #tpu.memory_space<vmem>>, vector<2x32xf32>,
    %c0_35 = arith.constant 0 : index
    %c0_36 = arith.constant 0 : index
    %44 = vector.load %arg15[%c0_35, %c0_36] : memref<2x32xf32, #tpu.memory_space<vmem>>, vector<2x32xf32>
    tpu.vector_store %arg15[%c0_35, %c0_36], %17 {strides = array<i32>} : memref<2x32xf32, #tpu.memory_space<vmem>>, vector<2x32xf32>,
    return
  }
  func.func @transform_0(%arg0: i32) -> (i32, i32) {
    %c0_i32 = arith.constant 0 : i32
    %c0_i32_0 = arith.constant 0 : i32
    return %arg0, %c0_i32 : i32, i32
  }
  func.func @transform_1(%arg0: i32) -> (i32, i32) {
    %c0_i32 = arith.constant 0 : i32
    %c0_i32_0 = arith.constant 0 : i32
    return %arg0, %c0_i32 : i32, i32
  }
  func.func @transform_2(%arg0: i32) -> (i32, i32) {
    %c0_i32 = arith.constant 0 : i32
    %c0_i32_0 = arith.constant 0 : i32
    %c0_i32_1 = arith.constant 0 : i32
    return %c0_i32, %c0_i32_0 : i32, i32
  }
  func.func @transform_3(%arg0: i32) -> (i32, i32) {
    %c0_i32 = arith.constant 0 : i32
    %c0_i32_0 = arith.constant 0 : i32
    %c0_i32_1 = arith.constant 0 : i32
    return %c0_i32, %c0_i32_0 : i32, i32
  }
  func.func @transform_4(%arg0: i32) -> (i32, i32) {
    %c0_i32 = arith.constant 0 : i32
    %c0_i32_0 = arith.constant 0 : i32
    %c0_i32_1 = arith.constant 0 : i32
    return %c0_i32, %c0_i32_0 : i32, i32
  }
  func.func @transform_5(%arg0: i32) -> (i32, i32) {
    %c0_i32 = arith.constant 0 : i32
    %c0_i32_0 = arith.constant 0 : i32
    %c0_i32_1 = arith.constant 0 : i32
    return %c0_i32, %c0_i32_0 : i32, i32
  }
  func.func @transform_6(%arg0: i32) -> (i32, i32) {
    %c0_i32 = arith.constant 0 : i32
    %c0_i32_0 = arith.constant 0 : i32
    %c0_i32_1 = arith.constant 0 : i32
    return %c0_i32, %c0_i32_0 : i32, i32
  }
  func.func @transform_7(%arg0: i32) -> (i32, i32) {
    %c0_i32 = arith.constant 0 : i32
    %c0_i32_0 = arith.constant 0 : i32
    %c0_i32_1 = arith.constant 0 : i32
    return %c0_i32, %c0_i32_0 : i32, i32
  }
  func.func @transform_8(%arg0: i32) -> (i32, i32) {
    %c0_i32 = arith.constant 0 : i32
    %c0_i32_0 = arith.constant 0 : i32
    %c0_i32_1 = arith.constant 0 : i32
    return %c0_i32, %c0_i32_0 : i32, i32
  }
  func.func @transform_9(%arg0: i32) -> (i32, i32) {
    %c0_i32 = arith.constant 0 : i32
    %c0_i32_0 = arith.constant 0 : i32
    %c0_i32_1 = arith.constant 0 : i32
    return %c0_i32, %c0_i32_0 : i32, i32
  }
  func.func @transform_10(%arg0: i32) -> (i32, i32) {
    %c0_i32 = arith.constant 0 : i32
    %c0_i32_0 = arith.constant 0 : i32
    %c0_i32_1 = arith.constant 0 : i32
    return %c0_i32, %c0_i32_0 : i32, i32
  }
  func.func @transform_11(%arg0: i32) -> (i32, i32) {
    %c0_i32 = arith.constant 0 : i32
    %c0_i32_0 = arith.constant 0 : i32
    %c0_i32_1 = arith.constant 0 : i32
    return %c0_i32, %c0_i32_0 : i32, i32
  }
  func.func @transform_12(%arg0: i32) -> (i32, i32) {
    %c0_i32 = arith.constant 0 : i32
    %c0_i32_0 = arith.constant 0 : i32
    return %arg0, %c0_i32 : i32, i32
  }
  func.func @transform_13(%arg0: i32) -> (i32, i32) {
    %c0_i32 = arith.constant 0 : i32
    %c0_i32_0 = arith.constant 0 : i32
    return %arg0, %c0_i32 : i32, i32
  }
  func.func @transform_14(%arg0: i32) -> (i32, i32) {
    %c0_i32 = arith.constant 0 : i32
    %c0_i32_0 = arith.constant 0 : i32
    return %arg0, %c0_i32 : i32, i32
  }
}

</mosaic_0001>

<llo_original>
// kernel: vae_forward.1
$region0: #{vae_forward.1}
  #allocation0 [shape = 'u32[]', space=smem, size = 0x4, offset = 0x4, fixed_abs, tag = 'smem constant byte address 0x4 - core index']
  #allocation1 [shape = 'u32[144,128]{1,0:T(1,128)}', space=vmem, size = 0x12000, scoped, tag = 'internal scratch']
  %s0 = inlined_call_operand.vmem [shape: f32[2,128], index: 0, kind: input, shape index: {}]
  %s1 = inlined_call_operand.vmem [shape: f32[2,32], index: 1, kind: input, shape index: {}]
  %s2 = inlined_call_operand.vmem [shape: f32[128,64], index: 2, kind: input, shape index: {}]
  %s3 = inlined_call_operand.vmem [shape: f32[1,64], index: 3, kind: input, shape index: {}]
  %s4 = inlined_call_operand.vmem [shape: f32[64,32], index: 4, kind: input, shape index: {}]
  %s5 = inlined_call_operand.vmem [shape: f32[1,32], index: 5, kind: input, shape index: {}]
  %s6 = inlined_call_operand.vmem [shape: f32[64,32], index: 6, kind: input, shape index: {}]
  %s7 = inlined_call_operand.vmem [shape: f32[1,32], index: 7, kind: input, shape index: {}]
  %s8 = inlined_call_operand.vmem [shape: f32[32,64], index: 8, kind: input, shape index: {}]
  %s9 = inlined_call_operand.vmem [shape: f32[1,64], index: 9, kind: input, shape index: {}]
  %s10 = inlined_call_operand.vmem [shape: f32[64,128], index: 10, kind: input, shape index: {}]
  %s11 = inlined_call_operand.vmem [shape: f32[1,128], index: 11, kind: input, shape index: {}]
  %s12 = inlined_call_operand.vmem [shape: bf16[2,128], index: 12, kind: output, shape index: {0}]
  %s13 = inlined_call_operand.vmem [shape: f32[2,32], index: 13, kind: output, shape index: {1}]
  %s14 = inlined_call_operand.vmem [shape: f32[2,32], index: 14, kind: output, shape index: {2}]
  %15 = xla_tuple %s12, %s13, %s14
  %s16 = sld [smem:[#allocation0]]
  $region74: #{vae_forward.1} parent=0
    _
  %s18 = ssub.s32 1, %s16
  %s19 = scalar_select 0, %s18, %s16
  // Predicated region
  $region2: #{vae_forward.1} parent=0 // pred_check
    _
  $region3: #{vae_forward.1} parent=0 // pred_check_branch
    %21 = sbr.rel (0) target = $region5
  $region4: #{vae_forward.1} parent=0 // pred_region
    _
  $region5: #{vae_forward.1} parent=0 // pred_fallthru
    _
  // Predicated region
  $region6: #{vae_forward.1} parent=0 // pred_check
    _
  $region7: #{vae_forward.1} parent=0 // pred_check_branch
    %23 = sbr.rel (0) target = $region9
  $region8: #{vae_forward.1} parent=0 // pred_region
    _
  $region9: #{vae_forward.1} parent=0 // pred_fallthru
    _
  // Predicated region
  $region10: #{vae_forward.1} parent=0 // pred_check
    _
  $region11: #{vae_forward.1} parent=0 // pred_check_branch
    %25 = sbr.rel (0) target = $region13
  $region12: #{vae_forward.1} parent=0 // pred_region
    _
  $region13: #{vae_forward.1} parent=0 // pred_fallthru
    _
  // Predicated region
  $region14: #{vae_forward.1} parent=0 // pred_check
    _
  $region15: #{vae_forward.1} parent=0 // pred_check_branch
    %27 = sbr.rel (0) target = $region17
  $region16: #{vae_forward.1} parent=0 // pred_region
    _
  $region17: #{vae_forward.1} parent=0 // pred_fallthru
    _
  // Predicated region
  $region18: #{vae_forward.1} parent=0 // pred_check
    _
  $region19: #{vae_forward.1} parent=0 // pred_check_branch
    %29 = sbr.rel (0) target = $region21
  $region20: #{vae_forward.1} parent=0 // pred_region
    _
  $region21: #{vae_forward.1} parent=0 // pred_fallthru
    _
  // Predicated region
  $region22: #{vae_forward.1} parent=0 // pred_check
    _
  $region23: #{vae_forward.1} parent=0 // pred_check_branch
    %31 = sbr.rel (0) target = $region25
  $region24: #{vae_forward.1} parent=0 // pred_region
    _
  $region25: #{vae_forward.1} parent=0 // pred_fallthru
    _
  // Predicated region
  $region26: #{vae_forward.1} parent=0 // pred_check
    _
  $region27: #{vae_forward.1} parent=0 // pred_check_branch
    %33 = sbr.rel (0) target = $region29
  $region28: #{vae_forward.1} parent=0 // pred_region
    _
  $region29: #{vae_forward.1} parent=0 // pred_fallthru
    _
  // Predicated region
  $region30: #{vae_forward.1} parent=0 // pred_check
    _
  $region31: #{vae_forward.1} parent=0 // pred_check_branch
    %35 = sbr.rel (0) target = $region33
  $region32: #{vae_forward.1} parent=0 // pred_region
    _
  $region33: #{vae_forward.1} parent=0 // pred_fallthru
    _
  // Predicated region
  $region34: #{vae_forward.1} parent=0 // pred_check
    _
  $region35: #{vae_forward.1} parent=0 // pred_check_branch
    %37 = sbr.rel (0) target = $region37
  $region36: #{vae_forward.1} parent=0 // pred_region
    _
  $region37: #{vae_forward.1} parent=0 // pred_fallthru
    _
  // Predicated region
  $region38: #{vae_forward.1} parent=0 // pred_check
    _
  $region39: #{vae_forward.1} parent=0 // pred_check_branch
    %39 = sbr.rel (0) target = $region41
  $region40: #{vae_forward.1} parent=0 // pred_region
    _
  $region41: #{vae_forward.1} parent=0 // pred_fallthru
    _
  // Predicated region
  $region42: #{vae_forward.1} parent=0 // pred_check
    _
  $region43: #{vae_forward.1} parent=0 // pred_check_branch
    %41 = sbr.rel (0) target = $region45
  $region44: #{vae_forward.1} parent=0 // pred_region
    _
  $region45: #{vae_forward.1} parent=0 // pred_fallthru
    _
  // Predicated region
  $region46: #{vae_forward.1} parent=0 // pred_check
    _
  $region47: #{vae_forward.1} parent=0 // pred_check_branch
    %43 = sbr.rel (0) target = $region49
  $region48: #{vae_forward.1} parent=0 // pred_region
    _
  $region49: #{vae_forward.1} parent=0 // pred_fallthru
    _
  %v44 = vld [vmem:[%s0] sm:$0x3]
  %v45 = vld [vmem:[%s2] sm:$0xff]
  %v46 = vld [vmem:[%s2 + $0x8] sm:$0xff]
  %v47 = vld [vmem:[%s2 + $0x10] sm:$0xff]
  %v48 = vld [vmem:[%s2 + $0x18] sm:$0xff]
  %v49 = vld [vmem:[%s2 + $0x20] sm:$0xff]
  %v50 = vld [vmem:[%s2 + $0x28] sm:$0xff]
  %v51 = vld [vmem:[%s2 + $0x30] sm:$0xff]
  %v52 = vld [vmem:[%s2 + $0x38] sm:$0xff]
  %v53 = vld [vmem:[%s2 + $0x40] sm:$0xff]
  %v54 = vld [vmem:[%s2 + $0x48] sm:$0xff]
  %v55 = vld [vmem:[%s2 + $0x50] sm:$0xff]
  %v56 = vld [vmem:[%s2 + $0x58] sm:$0xff]
  %v57 = vld [vmem:[%s2 + $0x60] sm:$0xff]
  %v58 = vld [vmem:[%s2 + $0x68] sm:$0xff]
  %v59 = vld [vmem:[%s2 + $0x70] sm:$0xff]
  %v60 = vld [vmem:[%s2 + $0x78] sm:$0xff]
  %v61 = vld [vmem:[%s3] sm:$0x1]
  %v63 = vlaneseq
  %v64 = vshrl.u32 %v63, 7
  %v65 = vsub.s32 0, %v64
  %v66 = vrot.slane %v61, %v65
  %68 = vmatprep.subr.mxu0 0.0
  %69 = vmatpush1.msra.mxu0 %v45
  %70 = vmatprep.subr.mxu0 0.0
  %71 = vmatpush1.msra.mxu0 %v46
  %72 = vmatprep.subr.mxu0 0.0
  %73 = vmatpush1.msra.mxu0 %v47
  %74 = vmatprep.subr.mxu0 0.0
  %75 = vmatpush1.msra.mxu0 %v48
  %76 = vmatprep.subr.mxu0 0.0
  %77 = vmatpush1.msra.mxu0 %v49
  %78 = vmatprep.subr.mxu0 0.0
  %79 = vmatpush1.msra.mxu0 %v50
  %80 = vmatprep.subr.mxu0 0.0
  %81 = vmatpush1.msra.mxu0 %v51
  %82 = vmatprep.subr.mxu0 0.0
  %83 = vmatpush1.msra.mxu0 %v52
  %84 = vmatprep.subr.mxu0 0.0
  %85 = vmatpush1.msra.mxu0 %v53
  %86 = vmatprep.subr.mxu0 0.0
  %87 = vmatpush1.msra.mxu0 %v54
  %88 = vmatprep.subr.mxu0 0.0
  %89 = vmatpush1.msra.mxu0 %v55
  %90 = vmatprep.subr.mxu0 0.0
  %91 = vmatpush1.msra.mxu0 %v56
  %92 = vmatprep.subr.mxu0 0.0
  %93 = vmatpush1.msra.mxu0 %v57
  %94 = vmatprep.subr.mxu0 0.0
  %95 = vmatpush1.msra.mxu0 %v58
  %96 = vmatprep.subr.mxu0 0.0
  %97 = vmatpush1.msra.mxu0 %v59
  %98 = vmatprep.subr.mxu0 0.0
  %99 = vmatpush1.msra.mxu0 %v60
  %100 = vmatprep.subr.mxu0 0.0
  %101 = vmatpush1.msra.mxu0 0.0
  %102 = vmatprep.subr.mxu0 0.0
  %103 = vmatpush1.msra.mxu0 0.0
  %104 = vmatprep.subr.mxu0 0.0
  %105 = vmatpush1.msra.mxu0 0.0
  %106 = vmatprep.subr.mxu0 0.0
  %107 = vmatpush1.msra.mxu0 0.0
  %108 = vmatprep.subr.mxu0 0.0
  %109 = vmatpush1.msra.mxu0 0.0
  %110 = vmatprep.subr.mxu0 0.0
  %111 = vmatpush1.msra.mxu0 0.0
  %112 = vmatprep.subr.mxu0 0.0
  %113 = vmatpush1.msra.mxu0 0.0
  %114 = vmatprep.subr.mxu0 0.0
  %115 = vmatpush1.msra.mxu0 0.0
  %116 = vmatprep.subr.mxu0 0.0
  %117 = vmatpush1.msra.mxu0 0.0
  %118 = vmatprep.subr.mxu0 0.0
  %119 = vmatpush1.msra.mxu0 0.0
  %120 = vmatprep.subr.mxu0 0.0
  %121 = vmatpush1.msra.mxu0 0.0
  %122 = vmatprep.subr.mxu0 0.0
  %123 = vmatpush1.msra.mxu0 0.0
  %124 = vmatprep.subr.mxu0 0.0
  %125 = vmatpush1.msra.mxu0 0.0
  %126 = vmatprep.subr.mxu0 0.0
  %127 = vmatpush1.msra.mxu0 0.0
  %128 = vmatprep.subr.mxu0 0.0
  %129 = vmatpush1.msra.mxu0 0.0
  %130 = vmatprep.subr.mxu0 0.0
  %131 = vmatpush1.msra.mxu0 0.0
  %132 = vmatprep.mubr.f32.mxu0 0.0
  %133 = vmatmul.mubr.f32.gmra.mrb[0].mxu0 %v44
  %v134 = vpop.f32.mrb[0].mxu0
  %v135 = vadd.f32 %v66, %v134
  %v136 = vpop.f32.mrb[0].mxu0
  %137 = vdwg.mxu0
  %v138 = vmax.f32 %v135, 0.0
  %v139 = vld [vmem:[%s4] sm:$0xff]
  %v140 = vld [vmem:[%s4 + $0x8] sm:$0xff]
  %v141 = vld [vmem:[%s4 + $0x10] sm:$0xff]
  %v142 = vld [vmem:[%s4 + $0x18] sm:$0xff]
  %v143 = vld [vmem:[%s4 + $0x20] sm:$0xff]
  %v144 = vld [vmem:[%s4 + $0x28] sm:$0xff]
  %v145 = vld [vmem:[%s4 + $0x30] sm:$0xff]
  %v146 = vld [vmem:[%s4 + $0x38] sm:$0xff]
  %v147 = vld [vmem:[%s5] sm:$0x1]
  %v149 = vlaneseq
  %v150 = vshrl.u32 %v149, 7
  %v151 = vsub.s32 0, %v150
  %v152 = vrot.slane %v147, %v151
  %vm154 = vcmask 523264
  %v156 = vsel %vm154, %v138, 0
  %158 = vmatprep.subr.mxu0 0.0
  %159 = vmatpush1.msra.mxu0 %v139
  %160 = vmatprep.subr.mxu0 0.0
  %161 = vmatpush1.msra.mxu0 %v140
  %162 = vmatprep.subr.mxu0 0.0
  %163 = vmatpush1.msra.mxu0 %v141
  %164 = vmatprep.subr.mxu0 0.0
  %165 = vmatpush1.msra.mxu0 %v142
  %166 = vmatprep.subr.mxu0 0.0
  %167 = vmatpush1.msra.mxu0 %v143
  %168 = vmatprep.subr.mxu0 0.0
  %169 = vmatpush1.msra.mxu0 %v144
  %170 = vmatprep.subr.mxu0 0.0
  %171 = vmatpush1.msra.mxu0 %v145
  %172 = vmatprep.subr.mxu0 0.0
  %173 = vmatpush1.msra.mxu0 %v146
  %174 = vmatprep.subr.mxu0 0.0
  %175 = vmatpush1.msra.mxu0 0.0
  %176 = vmatprep.subr.mxu0 0.0
  %177 = vmatpush1.msra.mxu0 0.0
  %178 = vmatprep.subr.mxu0 0.0
  %179 = vmatpush1.msra.mxu0 0.0
  %180 = vmatprep.subr.mxu0 0.0
  %181 = vmatpush1.msra.mxu0 0.0
  %182 = vmatprep.subr.mxu0 0.0
  %183 = vmatpush1.msra.mxu0 0.0
  %184 = vmatprep.subr.mxu0 0.0
  %185 = vmatpush1.msra.mxu0 0.0
  %186 = vmatprep.subr.mxu0 0.0
  %187 = vmatpush1.msra.mxu0 0.0
  %188 = vmatprep.subr.mxu0 0.0
  %189 = vmatpush1.msra.mxu0 0.0
  %190 = vmatprep.subr.mxu0 0.0
  %191 = vmatpush1.msra.mxu0 0.0
  %192 = vmatprep.subr.mxu0 0.0
  %193 = vmatpush1.msra.mxu0 0.0
  %194 = vmatprep.subr.mxu0 0.0
  %195 = vmatpush1.msra.mxu0 0.0
  %196 = vmatprep.subr.mxu0 0.0
  %197 = vmatpush1.msra.mxu0 0.0
  %198 = vmatprep.subr.mxu0 0.0
  %199 = vmatpush1.msra.mxu0 0.0
  %200 = vmatprep.subr.mxu0 0.0
  %201 = vmatpush1.msra.mxu0 0.0
  %202 = vmatprep.subr.mxu0 0.0
  %203 = vmatpush1.msra.mxu0 0.0
  %204 = vmatprep.subr.mxu0 0.0
  %205 = vmatpush1.msra.mxu0 0.0
  %206 = vmatprep.subr.mxu0 0.0
  %207 = vmatpush1.msra.mxu0 0.0
  %208 = vmatprep.subr.mxu0 0.0
  %209 = vmatpush1.msra.mxu0 0.0
  %210 = vmatprep.subr.mxu0 0.0
  %211 = vmatpush1.msra.mxu0 0.0
  %212 = vmatprep.subr.mxu0 0.0
  %213 = vmatpush1.msra.mxu0 0.0
  %214 = vmatprep.subr.mxu0 0.0
  %215 = vmatpush1.msra.mxu0 0.0
  %216 = vmatprep.subr.mxu0 0.0
  %217 = vmatpush1.msra.mxu0 0.0
  %218 = vmatprep.subr.mxu0 0.0
  %219 = vmatpush1.msra.mxu0 0.0
  %220 = vmatprep.subr.mxu0 0.0
  %221 = vmatpush1.msra.mxu0 0.0
  %222 = vmatprep.mubr.f32.mxu0 0.0
  %223 = vmatmul.mubr.f32.gmra.mrb[0].mxu0 %v156
  %v224 = vpop.f32.mrb[0].mxu0
  %v225 = vadd.f32 %v152, %v224
  %v226 = vpop.f32.mrb[0].mxu0
  %227 = vdwg.mxu0
  %v228 = vld [vmem:[%s6] sm:$0xff]
  %v229 = vld [vmem:[%s6 + $0x8] sm:$0xff]
  %v230 = vld [vmem:[%s6 + $0x10] sm:$0xff]
  %v231 = vld [vmem:[%s6 + $0x18] sm:$0xff]
  %v232 = vld [vmem:[%s6 + $0x20] sm:$0xff]
  %v233 = vld [vmem:[%s6 + $0x28] sm:$0xff]
  %v234 = vld [vmem:[%s6 + $0x30] sm:$0xff]
  %v235 = vld [vmem:[%s6 + $0x38] sm:$0xff]
  %v236 = vld [vmem:[%s7] sm:$0x1]
  %v238 = vlaneseq
  %v239 = vshrl.u32 %v238, 7
  %v240 = vsub.s32 0, %v239
  %v241 = vrot.slane %v236, %v240
  %243 = vmatprep.subr.mxu0 0.0
  %244 = vmatpush1.msra.mxu0 %v228
  %245 = vmatprep.subr.mxu0 0.0
  %246 = vmatpush1.msra.mxu0 %v229
  %247 = vmatprep.subr.mxu0 0.0
  %248 = vmatpush1.msra.mxu0 %v230
  %249 = vmatprep.subr.mxu0 0.0
  %250 = vmatpush1.msra.mxu0 %v231
  %251 = vmatprep.subr.mxu0 0.0
  %252 = vmatpush1.msra.mxu0 %v232
  %253 = vmatprep.subr.mxu0 0.0
  %254 = vmatpush1.msra.mxu0 %v233
  %255 = vmatprep.subr.mxu0 0.0
  %256 = vmatpush1.msra.mxu0 %v234
  %257 = vmatprep.subr.mxu0 0.0
  %258 = vmatpush1.msra.mxu0 %v235
  %259 = vmatprep.subr.mxu0 0.0
  %260 = vmatpush1.msra.mxu0 0.0
  %261 = vmatprep.subr.mxu0 0.0
  %262 = vmatpush1.msra.mxu0 0.0
  %263 = vmatprep.subr.mxu0 0.0
  %264 = vmatpush1.msra.mxu0 0.0
  %265 = vmatprep.subr.mxu0 0.0
  %266 = vmatpush1.msra.mxu0 0.0
  %267 = vmatprep.subr.mxu0 0.0
  %268 = vmatpush1.msra.mxu0 0.0
  %269 = vmatprep.subr.mxu0 0.0
  %270 = vmatpush1.msra.mxu0 0.0
  %271 = vmatprep.subr.mxu0 0.0
  %272 = vmatpush1.msra.mxu0 0.0
  %273 = vmatprep.subr.mxu0 0.0
  %274 = vmatpush1.msra.mxu0 0.0
  %275 = vmatprep.subr.mxu0 0.0
  %276 = vmatpush1.msra.mxu0 0.0
  %277 = vmatprep.subr.mxu0 0.0
  %278 = vmatpush1.msra.mxu0 0.0
  %279 = vmatprep.subr.mxu0 0.0
  %280 = vmatpush1.msra.mxu0 0.0
  %281 = vmatprep.subr.mxu0 0.0
  %282 = vmatpush1.msra.mxu0 0.0
  %283 = vmatprep.subr.mxu0 0.0
  %284 = vmatpush1.msra.mxu0 0.0
  %285 = vmatprep.subr.mxu0 0.0
  %286 = vmatpush1.msra.mxu0 0.0
  %287 = vmatprep.subr.mxu0 0.0
  %288 = vmatpush1.msra.mxu0 0.0
  %289 = vmatprep.subr.mxu0 0.0
  %290 = vmatpush1.msra.mxu0 0.0
  %291 = vmatprep.subr.mxu0 0.0
  %292 = vmatpush1.msra.mxu0 0.0
  %293 = vmatprep.subr.mxu0 0.0
  %294 = vmatpush1.msra.mxu0 0.0
  %295 = vmatprep.subr.mxu0 0.0
  %296 = vmatpush1.msra.mxu0 0.0
  %297 = vmatprep.subr.mxu0 0.0
  %298 = vmatpush1.msra.mxu0 0.0
  %299 = vmatprep.subr.mxu0 0.0
  %300 = vmatpush1.msra.mxu0 0.0
  %301 = vmatprep.subr.mxu0 0.0
  %302 = vmatpush1.msra.mxu0 0.0
  %303 = vmatprep.subr.mxu0 0.0
  %304 = vmatpush1.msra.mxu0 0.0
  %305 = vmatprep.subr.mxu0 0.0
  %306 = vmatpush1.msra.mxu0 0.0
  %307 = vmatprep.mubr.f32.mxu0 0.0
  %308 = vmatmul.mubr.f32.gmra.mrb[0].mxu0 %v156
  %v309 = vpop.f32.mrb[0].mxu0
  %v310 = vadd.f32 %v241, %v309
  %v311 = vpop.f32.mrb[0].mxu0
  %312 = vdwg.mxu0
  %v313 = vld [vmem:[%s1] sm:$0x3]
  %v314 = vmul.f32 %v310, 0.5
  %v315 = vmul.f32 %v314, 1.442695
  %v316 = vpow.pop %v315
  %v317 = vmul.f32 %v313, %v316
  %v318 = vadd.f32 %v225, %v317
  %v319 = vld [vmem:[%s8] sm:$0xff]
  %v320 = vld [vmem:[%s8 + $0x8] sm:$0xff]
  %v321 = vld [vmem:[%s8 + $0x10] sm:$0xff]
  %v322 = vld [vmem:[%s8 + $0x18] sm:$0xff]
  %v323 = vld [vmem:[%s9] sm:$0x1]
  %v325 = vlaneseq
  %v326 = vshrl.u32 %v325, 7
  %v327 = vsub.s32 0, %v326
  %v328 = vrot.slane %v323, %v327
  %vm330 = vcmask 261120
  %v332 = vsel %vm330, %v318, 0
  %334 = vmatprep.subr.mxu0 0.0
  %335 = vmatpush1.msra.mxu0 %v319
  %336 = vmatprep.subr.mxu0 0.0
  %337 = vmatpush1.msra.mxu0 %v320
  %338 = vmatprep.subr.mxu0 0.0
  %339 = vmatpush1.msra.mxu0 %v321
  %340 = vmatprep.subr.mxu0 0.0
  %341 = vmatpush1.msra.mxu0 %v322
  %342 = vmatprep.subr.mxu0 0.0
  %343 = vmatpush1.msra.mxu0 0.0
  %344 = vmatprep.subr.mxu0 0.0
  %345 = vmatpush1.msra.mxu0 0.0
  %346 = vmatprep.subr.mxu0 0.0
  %347 = vmatpush1.msra.mxu0 0.0
  %348 = vmatprep.subr.mxu0 0.0
  %349 = vmatpush1.msra.mxu0 0.0
  %350 = vmatprep.subr.mxu0 0.0
  %351 = vmatpush1.msra.mxu0 0.0
  %352 = vmatprep.subr.mxu0 0.0
  %353 = vmatpush1.msra.mxu0 0.0
  %354 = vmatprep.subr.mxu0 0.0
  %355 = vmatpush1.msra.mxu0 0.0
  %356 = vmatprep.subr.mxu0 0.0
  %357 = vmatpush1.msra.mxu0 0.0
  %358 = vmatprep.subr.mxu0 0.0
  %359 = vmatpush1.msra.mxu0 0.0
  %360 = vmatprep.subr.mxu0 0.0
  %361 = vmatpush1.msra.mxu0 0.0
  %362 = vmatprep.subr.mxu0 0.0
  %363 = vmatpush1.msra.mxu0 0.0
  %364 = vmatprep.subr.mxu0 0.0
  %365 = vmatpush1.msra.mxu0 0.0
  %366 = vmatprep.subr.mxu0 0.0
  %367 = vmatpush1.msra.mxu0 0.0
  %368 = vmatprep.subr.mxu0 0.0
  %369 = vmatpush1.msra.mxu0 0.0
  %370 = vmatprep.subr.mxu0 0.0
  %371 = vmatpush1.msra.mxu0 0.0
  %372 = vmatprep.subr.mxu0 0.0
  %373 = vmatpush1.msra.mxu0 0.0
  %374 = vmatprep.subr.mxu0 0.0
  %375 = vmatpush1.msra.mxu0 0.0
  %376 = vmatprep.subr.mxu0 0.0
  %377 = vmatpush1.msra.mxu0 0.0
  %378 = vmatprep.subr.mxu0 0.0
  %379 = vmatpush1.msra.mxu0 0.0
  %380 = vmatprep.subr.mxu0 0.0
  %381 = vmatpush1.msra.mxu0 0.0
  %382 = vmatprep.subr.mxu0 0.0
  %383 = vmatpush1.msra.mxu0 0.0
  %384 = vmatprep.subr.mxu0 0.0
  %385 = vmatpush1.msra.mxu0 0.0
  %386 = vmatprep.subr.mxu0 0.0
  %387 = vmatpush1.msra.mxu0 0.0
  %388 = vmatprep.subr.mxu0 0.0
  %389 = vmatpush1.msra.mxu0 0.0
  %390 = vmatprep.subr.mxu0 0.0
  %391 = vmatpush1.msra.mxu0 0.0
  %392 = vmatprep.subr.mxu0 0.0
  %393 = vmatpush1.msra.mxu0 0.0
  %394 = vmatprep.subr.mxu0 0.0
  %395 = vmatpush1.msra.mxu0 0.0
  %396 = vmatprep.subr.mxu0 0.0
  %397 = vmatpush1.msra.mxu0 0.0
  %398 = vmatprep.mubr.f32.mxu0 0.0
  %399 = vmatmul.mubr.f32.gmra.mrb[0].mxu0 %v332
  %v400 = vpop.f32.mrb[0].mxu0
  %v401 = vadd.f32 %v328, %v400
  %v402 = vpop.f32.mrb[0].mxu0
  %403 = vdwg.mxu0
  %v404 = vmax.f32 %v401, 0.0
  %v405 = vld [vmem:[%s10] sm:$0xff]
  %v406 = vld [vmem:[%s10 + $0x8] sm:$0xff]
  %v407 = vld [vmem:[%s10 + $0x10] sm:$0xff]
  %v408 = vld [vmem:[%s10 + $0x18] sm:$0xff]
  %v409 = vld [vmem:[%s10 + $0x20] sm:$0xff]
  %v410 = vld [vmem:[%s10 + $0x28] sm:$0xff]
  %v411 = vld [vmem:[%s10 + $0x30] sm:$0xff]
  %v412 = vld [vmem:[%s10 + $0x38] sm:$0xff]
  %v413 = vld [vmem:[%s11] sm:$0x1]
  %v415 = vlaneseq
  %v416 = vshrl.u32 %v415, 7
  %v417 = vsub.s32 0, %v416
  %v418 = vrot.slane %v413, %v417
  %v421 = vsel %vm154, %v404, 0
  %423 = vmatprep.subr.mxu0 0.0
  %424 = vmatpush1.msra.mxu0 %v405
  %425 = vmatprep.subr.mxu0 0.0
  %426 = vmatpush1.msra.mxu0 %v406
  %427 = vmatprep.subr.mxu0 0.0
  %428 = vmatpush1.msra.mxu0 %v407
  %429 = vmatprep.subr.mxu0 0.0
  %430 = vmatpush1.msra.mxu0 %v408
  %431 = vmatprep.subr.mxu0 0.0
  %432 = vmatpush1.msra.mxu0 %v409
  %433 = vmatprep.subr.mxu0 0.0
  %434 = vmatpush1.msra.mxu0 %v410
  %435 = vmatprep.subr.mxu0 0.0
  %436 = vmatpush1.msra.mxu0 %v411
  %437 = vmatprep.subr.mxu0 0.0
  %438 = vmatpush1.msra.mxu0 %v412
  %439 = vmatprep.subr.mxu0 0.0
  %440 = vmatpush1.msra.mxu0 0.0
  %441 = vmatprep.subr.mxu0 0.0
  %442 = vmatpush1.msra.mxu0 0.0
  %443 = vmatprep.subr.mxu0 0.0
  %444 = vmatpush1.msra.mxu0 0.0
  %445 = vmatprep.subr.mxu0 0.0
  %446 = vmatpush1.msra.mxu0 0.0
  %447 = vmatprep.subr.mxu0 0.0
  %448 = vmatpush1.msra.mxu0 0.0
  %449 = vmatprep.subr.mxu0 0.0
  %450 = vmatpush1.msra.mxu0 0.0
  %451 = vmatprep.subr.mxu0 0.0
  %452 = vmatpush1.msra.mxu0 0.0
  %453 = vmatprep.subr.mxu0 0.0
  %454 = vmatpush1.msra.mxu0 0.0
  %455 = vmatprep.subr.mxu0 0.0
  %456 = vmatpush1.msra.mxu0 0.0
  %457 = vmatprep.subr.mxu0 0.0
  %458 = vmatpush1.msra.mxu0 0.0
  %459 = vmatprep.subr.mxu0 0.0
  %460 = vmatpush1.msra.mxu0 0.0
  %461 = vmatprep.subr.mxu0 0.0
  %462 = vmatpush1.msra.mxu0 0.0
  %463 = vmatprep.subr.mxu0 0.0
  %464 = vmatpush1.msra.mxu0 0.0
  %465 = vmatprep.subr.mxu0 0.0
  %466 = vmatpush1.msra.mxu0 0.0
  %467 = vmatprep.subr.mxu0 0.0
  %468 = vmatpush1.msra.mxu0 0.0
  %469 = vmatprep.subr.mxu0 0.0
  %470 = vmatpush1.msra.mxu0 0.0
  %471 = vmatprep.subr.mxu0 0.0
  %472 = vmatpush1.msra.mxu0 0.0
  %473 = vmatprep.subr.mxu0 0.0
  %474 = vmatpush1.msra.mxu0 0.0
  %475 = vmatprep.subr.mxu0 0.0
  %476 = vmatpush1.msra.mxu0 0.0
  %477 = vmatprep.subr.mxu0 0.0
  %478 = vmatpush1.msra.mxu0 0.0
  %479 = vmatprep.subr.mxu0 0.0
  %480 = vmatpush1.msra.mxu0 0.0
  %481 = vmatprep.subr.mxu0 0.0
  %482 = vmatpush1.msra.mxu0 0.0
  %483 = vmatprep.subr.mxu0 0.0
  %484 = vmatpush1.msra.mxu0 0.0
  %485 = vmatprep.subr.mxu0 0.0
  %486 = vmatpush1.msra.mxu0 0.0
  %487 = vmatprep.mubr.f32.mxu0 0.0
  %488 = vmatmul.mubr.f32.gmra.mrb[0].mxu0 %v421
  %v489 = vpop.f32.mrb[0].mxu0
  %v490 = vadd.f32 %v418, %v489
  %v491 = vpop.f32.mrb[0].mxu0
  %492 = vdwg.mxu0
  %v493 = vxor.u32 %v490, 2147483648
  %v494 = vmul.f32 %v493, 1.442695
  %v495 = vpow.pop %v494
  %v496 = vadd.f32 %v495, 1.0
  %v497 = vrcp.pop %v496
  %v498 = vmul.f32 1.0, %v497
  %v499 = vpack.c.bf16 %v498, %v498
  %500 = vst [vmem:[%s12] sm:$0x1] %v499
  %vm501 = vcmask 254976
  %502 = vst.msk [vmem:[%s13] sm:$0x3] %vm501, %v225
  %503 = vst.msk [vmem:[%s14] sm:$0x3] %vm501, %v310
  // Predicated region
  $region50: #{vae_forward.1} parent=0 // pred_check
    _
  $region51: #{vae_forward.1} parent=0 // pred_check_branch
    %505 = sbr.rel (0) target = $region53
  $region52: #{vae_forward.1} parent=0 // pred_region
    _
  $region53: #{vae_forward.1} parent=0 // pred_fallthru
    _
  // Predicated region
  $region54: #{vae_forward.1} parent=0 // pred_check
    _
  $region55: #{vae_forward.1} parent=0 // pred_check_branch
    %507 = sbr.rel (0) target = $region57
  $region56: #{vae_forward.1} parent=0 // pred_region
    _
  $region57: #{vae_forward.1} parent=0 // pred_fallthru
    _
  // Predicated region
  $region58: #{vae_forward.1} parent=0 // pred_check
    _
  $region59: #{vae_forward.1} parent=0 // pred_check_branch
    %509 = sbr.rel (0) target = $region61
  $region60: #{vae_forward.1} parent=0 // pred_region
    _
  $region61: #{vae_forward.1} parent=0 // pred_fallthru
    _
  // Predicated region
  $region62: #{vae_forward.1} parent=0 // pred_check
    _
  $region63: #{vae_forward.1} parent=0 // pred_check_branch
    %511 = sbr.rel (0) target = $region65
  $region64: #{vae_forward.1} parent=0 // pred_region
    _
  $region65: #{vae_forward.1} parent=0 // pred_fallthru
    _
  // Predicated region
  $region66: #{vae_forward.1} parent=0 // pred_check
    _
  $region67: #{vae_forward.1} parent=0 // pred_check_branch
    %513 = sbr.rel (0) target = $region69
  $region68: #{vae_forward.1} parent=0 // pred_region
    _
  $region69: #{vae_forward.1} parent=0 // pred_fallthru
    _
  // Predicated region
  $region70: #{vae_forward.1} parent=0 // pred_check
    _
  $region71: #{vae_forward.1} parent=0 // pred_check_branch
    %515 = sbr.rel (0) target = $region73
  $region72: #{vae_forward.1} parent=0 // pred_region
    _
  $region73: #{vae_forward.1} parent=0 // pred_fallthru
    _

</llo_original>
